<compile_context>
chip_gen: v7x
topology: tpu7x:2x2x1
jax: 0.10.0
libtpu: 0.0.40
codegen_flags: <defaults>
</compile_context>

<pallas_src>
import functools

import jax
import jax.numpy as jnp
from jax.experimental import pallas as pl
from jax.experimental.pallas import tpu as pltpu


def _decoder_kernel(w_ref, shift_ref, x_ref, o_ref, *, activation):
    # One (K, TM) output tile: y = (BN-scale-folded W^T) @ x_tile + shift ; activation(y).
    # K = Cout*s*s, Cin tiny -> the dot is fully hidden behind the streaming DMA (mem-bound op);
    # leave it on the MXU (per review: converting to VPU madds buys nothing).
    y = jnp.dot(w_ref[...], x_ref[...], preferred_element_type=jnp.float32)   # (K, TM)
    y = y + shift_ref[...]                                                     # (K, 1) lane bcast
    if activation == 'relu':
        y = jnp.maximum(y, 0.0)
    else:
        # sigmoid(y) == 0.5*(tanh(y/2)+1); tanh goes to the EUP slot, no VALU divide.
        y = 0.5 * (jnp.tanh(0.5 * y) + 1.0)
    o_ref[...] = y.astype(o_ref.dtype)


def _pick_tile(hw, n, cap):
    """Pick the pixel-axis tile TM.

    Prefers (a) no padding (TM divides H*W or TM == H*W), (b) TM a multiple of 128,
    (c) >= 2 total grid steps so v7x megacore has work for both TensorCores.
    Returns (tm, pad)."""
    cap = max(128, (cap // 128) * 128)
    if hw <= cap:
        if n == 1 and hw % 256 == 0:            # batch==1: split pixels so grid >= 2
            return hw // 2, 0
        return hw, 0                            # whole-sample tile (full-dim block is legal)
    for cand in range(cap, 127, -128):          # largest multiple of 128 that divides hw
        if hw % cand == 0:
            return cand, 0
    pad = (-hw) % cap                           # rare fallback: one padded copy of x
    return cap, pad


def decoder_module(x, weight, bias, gamma, beta, *, stride, activation='relu',
                   eps=1e-5, block_m=16384, out_layout='NCHW', out_dtype=jnp.float32):
    """x: (N, Cin, H, W) NCHW; weight: (Cin, Cout, s, s); bias/gamma/beta: (Cout,).

    out_layout='NCHW' (default) matches the PyTorch module; 'raw' returns the kernel's
    (N, Cout, s, s, H, W) layout and skips the final relayout pass."""
    N, Cin, H, W = x.shape
    wCin, Cout, kh, kw = weight.shape
    assert wCin == Cin and kh == stride and kw == stride
    s = stride
    ss = s * s
    K = Cout * ss
    HW = H * W
    M = N * HW
    f32 = jnp.float32

    # Free relayout: per-sample (Cin, HW) slabs are already channels-on-sublanes /
    # pixels-on-lanes. No HBM transpose of the input.
    x3 = x.reshape(N, Cin, HW).astype(f32)
    w_flat = weight.reshape(Cin, K).astype(f32)                    # column k = (co, ki, kj)

    # ---- BatchNorm2d batch statistics, analytic (no centered temp, no transpose) -------------
    # y[p, k] = x_p . w_k + b_co ; per-channel mean/var over the M*s*s values of a channel.
    gram = jnp.einsum('ncm,nkm->ck', x3, x3)                       # (Cin, Cin) uncentered Gram
    xbar = x3.sum(axis=(0, 2)) / M                                 # (Cin,)
    gram_c = gram - M * jnp.outer(xbar, xbar)                      # centered Gram
    # NOTE: uncentered-Gram centering can cancel if |mean| >> std; keep the max(var, 0) guard.
    bias_f = bias.astype(f32)
    b_cols = jnp.repeat(bias_f, ss)                                # (K,)
    m_cols = xbar @ w_flat + b_cols                                # (K,) per-column mean
    mean_ch = m_cols.reshape(Cout, ss).mean(axis=1)                # (Cout,)
    within = jnp.sum(w_flat * (gram_c @ w_flat), axis=0)           # (K,)  w_k^T Gc w_k
    between = M * (m_cols - jnp.repeat(mean_ch, ss)) ** 2          # (K,)
    var_ch = (within + between).reshape(Cout, ss).sum(axis=1) / (M * ss)   # biased batch variance
    var_ch = jnp.maximum(var_ch, 0.0)
    inv_ch = jax.lax.rsqrt(var_ch + eps)
    scale_ch = gamma.astype(f32) * inv_ch                          # (Cout,)
    shift_ch = beta.astype(f32) + (bias_f - mean_ch) * scale_ch    # (Cout,)

    # Fold BN scale into the weights; shift absorbs conv bias + BN mean/beta.
    w_scaled_t = (w_flat * jnp.repeat(scale_ch, ss)[None, :]).T    # (K, Cin)
    shift_cols = jnp.repeat(shift_ch, ss).reshape(K, 1)            # (K, 1)

    # ---- Pallas: one streaming pass, grid = (samples, pixel tiles) ----------------------------
    tm, pad = _pick_tile(HW, N, block_m)
    hw_p = HW + pad
    if pad:
        x3 = jnp.pad(x3, ((0, 0), (0, 0), (0, pad)))   # only when no 128-multiple divides HW
    grid = (N, hw_p // tm)

    kernel = functools.partial(_decoder_kernel, activation=activation)
    out_bytes = jnp.dtype(out_dtype).itemsize
    cost = pl.CostEstimate(
        flops=2 * K * Cin * N * hw_p,
        transcendentals=(K * N * hw_p if activation != 'relu' else 0),
        bytes_accessed=4 * (Cin * N * hw_p + K * Cin + K) + out_bytes * K * N * hw_p,
    )

    y3 = pl.pallas_call(
        kernel,
        out_shape=jax.ShapeDtypeStruct((N, K, hw_p), out_dtype),
        grid=grid,
        in_specs=[
            pl.BlockSpec((K, Cin), lambda n, j: (0, 0)),             # resident scale-folded W^T
            pl.BlockSpec((K, 1), lambda n, j: (0, 0)),               # resident shift
            pl.BlockSpec((None, Cin, tm), lambda n, j: (n, 0, j)),   # streamed pixel tiles
        ],
        out_specs=pl.BlockSpec((None, K, tm), lambda n, j: (n, 0, j)),  # lane-dense output tiles
        compiler_params=pltpu.CompilerParams(
            dimension_semantics=("parallel", "parallel"),   # v7x: shard (n, pixel) across 2 TCs
            vmem_limit_bytes=32 * 1024 * 1024,              # tiles are a few MiB even at tm=16384
        ),
        cost_estimate=cost,
    )(w_scaled_t, shift_cols, x3)

    if pad:
        y3 = y3[:, :, :HW]
    y6 = y3.reshape(N, Cout, s, s, H, W)          # axes (n, co, ki, kj, h, w)
    if out_layout == 'raw':
        return y6                                 # skip the relayout entirely (review option (b))
    # TODO(synk): fusing this s*s interleave into the kernel needs W*s >= 128 for lane-dense NCHW
    # stores; at small widths it stays one XLA relayout pass over the output.
    return jnp.transpose(y6, (0, 1, 4, 2, 5, 3)).reshape(N, Cout, H * s, W * s)


def _reference(x, weight, bias, gamma, beta, *, stride, activation='relu', eps=1e-5):
    """Pure-JAX reference mirroring the PyTorch module (BN in training mode)."""
    N, Cin, H, W = x.shape
    _, Cout, s, _ = weight.shape
    y = jnp.einsum('nchw,cokl->nohkwl', x, weight).reshape(N, Cout, H * s, W * s)
    y = y + bias[None, :, None, None]
    mean = y.mean(axis=(0, 2, 3), keepdims=True)
    var = y.var(axis=(0, 2, 3), keepdims=True)
    y = (y - mean) / jnp.sqrt(var + eps) * gamma[None, :, None, None] + beta[None, :, None, None]
    return jnp.maximum(y, 0.0) if activation == 'relu' else jax.nn.sigmoid(y)


if __name__ == "__main__":
    key = jax.random.PRNGKey(0)
    k1, k2, k3, k4, k5 = jax.random.split(key, 5)

    # Small shapes consistent with the module: input_channels=4, output_channels=4, stride=2
    N, Cin, H, W = 2, 4, 16, 16
    Cout, stride = 4, 2

    x = jax.random.normal(k1, (N, Cin, H, W), dtype=jnp.float32)
    weight = 0.2 * jax.random.normal(k2, (Cin, Cout, stride, stride), dtype=jnp.float32)
    bias = 0.1 * jax.random.normal(k3, (Cout,), dtype=jnp.float32)
    gamma = 1.0 + 0.1 * jax.random.normal(k4, (Cout,), dtype=jnp.float32)
    beta = 0.1 * jax.random.normal(k5, (Cout,), dtype=jnp.float32)

    # ReLU path
    out = decoder_module(x, weight, bias, gamma, beta, stride=stride, activation='relu')
    out = jax.block_until_ready(out)
    ref = _reference(x, weight, bias, gamma, beta, stride=stride, activation='relu')
    assert out.shape == (N, Cout, H * stride, W * stride)
    assert jnp.allclose(out, ref, atol=1e-4, rtol=1e-4), float(jnp.abs(out - ref).max())

    # Sigmoid path
    out_s = decoder_module(x, weight, bias, gamma, beta, stride=stride, activation='sigmoid')
    out_s = jax.block_until_ready(out_s)
    ref_s = _reference(x, weight, bias, gamma, beta, stride=stride, activation='sigmoid')
    assert jnp.allclose(out_s, ref_s, atol=1e-4, rtol=1e-4), float(jnp.abs(out_s - ref_s).max())

    print("KERNEL_OK")
</pallas_src>

<mosaic_0001>
module attributes {stable_mosaic.version = 11 : i64} {
  func.func @_decoder_kernel(%arg0: i32, %arg1: i32, %arg2: memref<16x4xf32, #tpu.memory_space<vmem>>, %arg3: memref<16x1xf32, #tpu.memory_space<vmem>>, %arg4: memref<1x4x256xf32, #tpu.memory_space<vmem>>, %arg5: memref<1x16x256xf32, #tpu.memory_space<vmem>>) attributes {dimension_semantics = [#tpu.dimension_semantics<parallel>, #tpu.dimension_semantics<parallel>], iteration_bounds = array<i64: 2, 1>, scalar_prefetch = 0 : i64, scratch_operands = 0 : i64, tpu.core_type = #tpu.core_type<tc>, window_params = [{pipeline_mode = #tpu.pipeline_mode<synchronous>, transform_indices = @transform_0, window_bounds = array<i64: 16, 4>}, {pipeline_mode = #tpu.pipeline_mode<synchronous>, transform_indices = @transform_1, window_bounds = array<i64: 16, 1>}, {transform_indices = @transform_2, window_bounds = array<i64: 1, 4, 256>}, {transform_indices = @transform_3, window_bounds = array<i64: 1, 16, 256>}]} {
    %c0 = arith.constant 0 : index
    %c0_0 = arith.constant 0 : index
    %0 = vector.load %arg2[%c0, %c0_0] : memref<16x4xf32, #tpu.memory_space<vmem>>, vector<16x4xf32>
    %c0_1 = arith.constant 0 : index
    %c0_2 = arith.constant 0 : index
    %c0_3 = arith.constant 0 : index
    %1 = vector.load %arg4[%c0_1, %c0_2, %c0_3] : memref<1x4x256xf32, #tpu.memory_space<vmem>>, vector<1x4x256xf32>
    %2 = vector.shape_cast %1 : vector<1x4x256xf32> to vector<4x256xf32>
    %cst = arith.constant dense<0.000000e+00> : vector<16x256xf32>
    %3 = tpu.matmul %0, %2, %cst {dimension_numbers = #tpu.dot_dimension_numbers<[1], [0], [0], [1], [0, 0, 1, 1], [], []>} : vector<16x4xf32>, vector<4x256xf32>, vector<16x256xf32> -> vector<16x256xf32>
    %c0_4 = arith.constant 0 : index
    %c0_5 = arith.constant 0 : index
    %4 = vector.load %arg3[%c0_4, %c0_5] : memref<16x1xf32, #tpu.memory_space<vmem>>, vector<16x1xf32>
    %5 = vector.broadcast %4 : vector<16x1xf32> to vector<16x256xf32>
    %6 = arith.addf %3, %5 : vector<16x256xf32>
    %cst_6 = arith.constant 0.000000e+00 : f32
    %7 = vector.broadcast %cst_6 : f32 to vector<16x256xf32>
    %8 = arith.maximumf %6, %7 : vector<16x256xf32>
    %c0_7 = arith.constant 0 : index
    %c0_8 = arith.constant 0 : index
    %c0_9 = arith.constant 0 : index
    %9 = vector.load %arg5[%c0_7, %c0_8, %c0_9] : memref<1x16x256xf32, #tpu.memory_space<vmem>>, vector<1x16x256xf32>
    %10 = vector.shape_cast %9 : vector<1x16x256xf32> to vector<16x256xf32>
    %11 = vector.shape_cast %8 : vector<16x256xf32> to vector<1x16x256xf32>
    tpu.vector_store %arg5[%c0_7, %c0_8, %c0_9], %11 {strides = array<i32>} : memref<1x16x256xf32, #tpu.memory_space<vmem>>, vector<1x16x256xf32>,
    return
  }
  func.func @transform_0(%arg0: i32, %arg1: i32) -> (i32, i32) {
    %c0_i32 = arith.constant 0 : i32
    %c0_i32_0 = arith.constant 0 : i32
    %c0_i32_1 = arith.constant 0 : i32
    return %c0_i32, %c0_i32_0 : i32, i32
  }
  func.func @transform_1(%arg0: i32, %arg1: i32) -> (i32, i32) {
    %c0_i32 = arith.constant 0 : i32
    %c0_i32_0 = arith.constant 0 : i32
    %c0_i32_1 = arith.constant 0 : i32
    return %c0_i32, %c0_i32_0 : i32, i32
  }
  func.func @transform_2(%arg0: i32, %arg1: i32) -> (i32, i32, i32) {
    %c0_i32 = arith.constant 0 : i32
    %c0_i32_0 = arith.constant 0 : i32
    return %arg0, %c0_i32, %arg1 : i32, i32, i32
  }
  func.func @transform_3(%arg0: i32, %arg1: i32) -> (i32, i32, i32) {
    %c0_i32 = arith.constant 0 : i32
    %c0_i32_0 = arith.constant 0 : i32
    return %arg0, %c0_i32, %arg1 : i32, i32, i32
  }
}

</mosaic_0001>

<llo_original>
// kernel: tpu_custom_call.1
$region0: #{tpu_custom_call.1}
  #allocation0 [shape = 'u32[]', space=smem, size = 0x4, offset = 0x4, fixed_abs, tag = 'smem constant byte address 0x4 - core index']
  #allocation1 [shape = 'u32[144,128]{1,0:T(1,128)}', space=vmem, size = 0x12000, scoped, tag = 'internal scratch']
  %s0 = inlined_call_operand.vmem [shape: f32[16,4], index: 0, kind: input, shape index: {}]
  %s1 = inlined_call_operand.vmem [shape: f32[16,1], index: 1, kind: input, shape index: {}]
  %s2 = inlined_call_operand.vmem [shape: f32[2,4,256], index: 2, kind: input, shape index: {}]
  %s3 = inlined_call_operand.hbm [shape: f32[2,16,256], index: 3, kind: output, shape index: {}]
  %s4 = sld [smem:[#allocation0]]
  $region45: #{tpu_custom_call.1} parent=0
    _
  %s6 = ssub.s32 1, %s4
  %s7 = scalar_select 0, %s6, %s4
  $region1: #{tpu_custom_call.1} parent=0
    #allocation2 [shape = 'u8[32768]{0}', space=vmem, size = 0x8000, scoped, tag = 'output window, operand 0']
    #allocation3 [shape = 's32[2]{0}', space=sflag, size = 0x8, scoped, tag = 'scoped memory for tpu_custom_call.1']
    %8 = vsyncpa [#allocation3], 0
    %s9 = scalar_lea.sflag [#allocation3], 1
    %10 = vsyncpa %s9, 0
    loop: start=0, step=1, limit=4
    $region2: #{tpu_custom_call.1} parent=1 // loop_pre_header
      _
    $region3: #{tpu_custom_call.1} parent=1 // loop_header
      %s12 = sphi 0, %s16
      %p13 = scmp.ge.s32.totalorder %s12, 4
      %s19 = sphi 0, %s31
      %s20 = sphi 0, %s27
      %s21 = sphi 0, %s19
      %s22 = sphi 0, %s20
      %s23 = sphi 0, %s21
      %s24 = sphi 0, %s22
      %s32 = sphi 0, %s32
      %s34 = sphi 0, %s32
      %s35 = sphi 0, %s34
      %s49 = sphi 0, %s35
      %s53 = sphi 0, %s53
      %s55 = sphi 0, %s53
      %s56 = sphi 0, %s55
      %s70 = sphi 0, %s56
      %s78 = sphi 0, %s80
      %s81 = sphi 0, %s78
      %s82 = sphi 0, %s81
      %s98 = sphi 0, %s82
      %s106 = sphi 0, %s108
      %s109 = sphi 0, %s106
      %s110 = sphi 0, %s109
      %s126 = sphi 0, %s110
    $region4: #{tpu_custom_call.1} parent=1 // loop_header_branch
      %15 = sbr.rel (%p13) target = $region8
    $region5: #{tpu_custom_call.1} parent=1 // loop_body
      %s17 = ssub.s32 %s12, 1
      %s18 = ssub.s32 %s12, 2
      %s25 = sadd.s32 1, %s20
      %p26 = scmp.ge.s32.totalorder %s25, 1
      %s27 = scalar_select %p26, 0, %s25
      %s28 = sadd.s32 1, %s19
      %s29 = scalar_select %p26, %s28, %s19
      %p30 = scmp.ge.s32.totalorder %s29, 2
      %s31 = scalar_select %p30, 0, %s29
      %s33 = sadd.s32 %s32, 1
      %p36 = scmp.eq.s32.totalorder %s12, 1
      %p37 = scmp.ne.s32.totalorder %s32, %s34
      %p38 = scmp.eq.s32.totalorder %s12, 0
      %p39 = por %p37, %p38
      %p40 = scmp.ne.s32.totalorder %s32, %s34
      %p41 = scmp.eq.s32.totalorder %s17, 1
      %p42 = por %p40, %p41
      %p43 = scmp.ne.s32.totalorder %s34, %s35
      %p44 = scmp.eq.s32.totalorder %s17, 0
      %p45 = por %p43, %p44
      %p46 = scmp.ne.s32.totalorder %s34, %s35
      %p47 = scmp.eq.s32.totalorder %s18, 1
      %p48 = por %p46, %p47
      %p50 = scmp.ne.s32.totalorder %s35, %s49
      %p51 = scmp.eq.s32.totalorder %s18, 0
      %p52 = por %p50, %p51
      %s54 = sadd.s32 %s53, 1
      %p57 = scmp.eq.s32.totalorder %s12, 1
      %p58 = scmp.ne.s32.totalorder %s53, %s55
      %p59 = scmp.eq.s32.totalorder %s12, 0
      %p60 = por %p58, %p59
      %p61 = scmp.ne.s32.totalorder %s53, %s55
      %p62 = scmp.eq.s32.totalorder %s17, 1
      %p63 = por %p61, %p62
      %p64 = scmp.ne.s32.totalorder %s55, %s56
      %p65 = scmp.eq.s32.totalorder %s17, 0
      %p66 = por %p64, %p65
      %p67 = scmp.ne.s32.totalorder %s55, %s56
      %p68 = scmp.eq.s32.totalorder %s18, 1
      %p69 = por %p67, %p68
      %p71 = scmp.ne.s32.totalorder %s56, %s70
      %p72 = scmp.eq.s32.totalorder %s18, 0
      %p73 = por %p71, %p72
      %s74 = ssub.s32 %s19, %s31
      %s75 = ssub.s32 %s20, %s27
      %s76 = sor.u32 %s74, %s75
      %p77 = scmp.eq.s32.totalorder %s76, 0
      %s79 = sadd.s32 %s78, 1
      %s80 = scalar_select %p77, %s78, %s79
      %p83 = pneg %p77
      %p84 = scmp.eq.s32.totalorder %s12, 1
      %p85 = por %p83, %p84
      %p86 = scmp.ne.s32.totalorder %s78, %s81
      %p87 = scmp.eq.s32.totalorder %s12, 0
      %p88 = por %p86, %p87
      %p89 = scmp.ne.s32.totalorder %s78, %s81
      %p90 = scmp.eq.s32.totalorder %s17, 1
      %p91 = por %p89, %p90
      %p92 = scmp.ne.s32.totalorder %s81, %s82
      %p93 = scmp.eq.s32.totalorder %s17, 0
      %p94 = por %p92, %p93
      %p95 = scmp.ne.s32.totalorder %s81, %s82
      %p96 = scmp.eq.s32.totalorder %s18, 1
      %p97 = por %p95, %p96
      %p99 = scmp.ne.s32.totalorder %s82, %s98
      %p100 = scmp.eq.s32.totalorder %s18, 0
      %p101 = por %p99, %p100
      %s102 = ssub.s32 %s19, %s31
      %s103 = ssub.s32 %s20, %s27
      %s104 = sor.u32 %s102, %s103
      %p105 = scmp.eq.s32.totalorder %s104, 0
      %s107 = sadd.s32 %s106, 1
      %s108 = scalar_select %p105, %s106, %s107
      %p111 = pneg %p105
      %p112 = scmp.eq.s32.totalorder %s12, 1
      %p113 = por %p111, %p112
      %p114 = scmp.ne.s32.totalorder %s106, %s109
      %p115 = scmp.eq.s32.totalorder %s12, 0
      %p116 = por %p114, %p115
      %p117 = scmp.ne.s32.totalorder %s106, %s109
      %p118 = scmp.eq.s32.totalorder %s17, 1
      %p119 = por %p117, %p118
      %p120 = scmp.ne.s32.totalorder %s109, %s110
      %p121 = scmp.eq.s32.totalorder %s17, 0
      %p122 = por %p120, %p121
      %p123 = scmp.ne.s32.totalorder %s109, %s110
      %p124 = scmp.eq.s32.totalorder %s18, 1
      %p125 = por %p123, %p124
      %p127 = scmp.ne.s32.totalorder %s110, %s126
      %p128 = scmp.eq.s32.totalorder %s18, 0
      %p129 = por %p127, %p128
      %p130 = scmp.le.s32.totalorder 1, %s12
      %p131 = scmp.lt.s32.totalorder %s12, 3
      %p132 = pnand %p130, %p131
      %p133 = pneg %p132
      // Predicated region
      $region9: #{tpu_custom_call.1} parent=5 // pred_check
        _
      $region10: #{tpu_custom_call.1} parent=5 // pred_check_branch
        %135 = sbr.rel (%p132) target = $region12
      $region11: #{tpu_custom_call.1} parent=5 // pred_region
        %s136 = ssub.s32 %s12, 1
        // Predicated region
        $region13: #{tpu_custom_call.1} parent=11 // pred_check
          %p137 = pneg %p45
        $region14: #{tpu_custom_call.1} parent=11 // pred_check_branch
          %139 = sbr.rel (%p137) target = $region16
        $region15: #{tpu_custom_call.1} parent=11 // pred_region
          _
        $region16: #{tpu_custom_call.1} parent=11 // pred_fallthru
          _
        // Predicated region
        $region17: #{tpu_custom_call.1} parent=11 // pred_check
          %p140 = pneg %p66
        $region18: #{tpu_custom_call.1} parent=11 // pred_check_branch
          %142 = sbr.rel (%p140) target = $region20
        $region19: #{tpu_custom_call.1} parent=11 // pred_region
          _
        $region20: #{tpu_custom_call.1} parent=11 // pred_fallthru
          _
      $region12: #{tpu_custom_call.1} parent=5 // pred_fallthru
        _
      %p143 = scmp.lt.s32.totalorder %s12, 2
      // Predicated region
      $region21: #{tpu_custom_call.1} parent=5 // pred_check
        %p144 = pneg %p143
      $region22: #{tpu_custom_call.1} parent=5 // pred_check_branch
        %146 = sbr.rel (%p144) target = $region24
      $region23: #{tpu_custom_call.1} parent=5 // pred_region
        // Predicated region
        $region25: #{tpu_custom_call.1} parent=23 // pred_check
          %p147 = pneg %p88
        $region26: #{tpu_custom_call.1} parent=23 // pred_check_branch
          %149 = sbr.rel (%p147) target = $region28
        $region27: #{tpu_custom_call.1} parent=23 // pred_region
          %s150 = smul.u32 2, %s20
          %p151 = scmp.lt.s32.totalorder %s19, 1
          %s152 = scalar_select %p151, %s19, 1
          %p153 = scmp.lt.s32.totalorder %s150, 1
          %s154 = scalar_select %p153, %s150, 1
          %s155 = smul.addr %s152, 2
          %s156 = sadd.s32 %s154, %s155
          %s157 = smul.addr %s156, 4
          %s158 = scalar_lea.vmem %s2, %s157
          %s159 = smul.u32 2, %s20
        $region28: #{tpu_custom_call.1} parent=23 // pred_fallthru
          _
      $region24: #{tpu_custom_call.1} parent=5 // pred_fallthru
        _
      %p160 = scmp.le.s32.totalorder 1, %s12
      %p161 = scmp.lt.s32.totalorder %s12, 3
      %p162 = pnand %p160, %p161
      %p163 = pneg %p162
      // Predicated region
      $region29: #{tpu_custom_call.1} parent=5 // pred_check
        _
      $region30: #{tpu_custom_call.1} parent=5 // pred_check_branch
        %165 = sbr.rel (%p162) target = $region32
      $region31: #{tpu_custom_call.1} parent=5 // pred_region
        %s166 = ssub.s32 %s12, 1
        %p167 = pneg %p45
        %p168 = pneg %p42
        %p169 = pneg %p66
        %p170 = pneg %p63
        %s171 = smul.u32 2, %s22
        %p172 = scmp.lt.s32.totalorder %s21, 1
        %s173 = scalar_select %p172, %s21, 1
        %p174 = scmp.lt.s32.totalorder %s171, 1
        %s175 = scalar_select %p174, %s171, 1
        %s176 = smul.addr %s173, 2
        %s177 = sadd.s32 %s175, %s176
        %s178 = smul.addr %s177, 4
        %s179 = scalar_lea.vmem %s2, %s178
        %p180 = pneg %p94
        %p181 = pneg %p91
        %p182 = pneg %p122
        %p183 = pneg %p119
        %s184 = sand.u32 %s109, 1
        %s185 = scalar_lea.sflag [#allocation3], %s184
        %s186 = sand.u32 %s109, 1
        %s187 = smul.addr %s186, 32
        %s188 = scalar_lea.vmem [#allocation2], %s187
        %s189 = smul.u32 2, %s22
        %p190 = scmp.lt.s32.totalorder %s21, 1
        %s191 = scalar_select %p190, %s21, 1
        %p192 = scmp.lt.s32.totalorder %s189, 1
        %s193 = scalar_select %p192, %s189, 1
        %s194 = smul.addr %s191, 2
        %s195 = sadd.s32 %s193, %s194
        %s196 = smul.addr %s195, 4
        %s197 = scalar_lea.vmem %s2, %s196
        %s198 = smul.u32 2, %s22
        %s199 = smul.u32 2, %s22
        %v200 = vld [vmem:[%s0] sm:$0xff]
        %v201 = vld [vmem:[%s0 + $0x8] sm:$0xff]
        %v202 = vld [vmem:[%s197] sm:$0xff]
        %v203 = vld [vmem:[%s1] sm:$0xff]
        %v204 = vld [vmem:[%s1 + $0x8] sm:$0xff]
        %206 = vset.pattern.permute.xlu0 0
        %207 = vperm.xlu0 %206, %v203
        %v208 = vpop.permute.xlu0 %207
        %211 = vset.pattern.permute.xlu0 0
        %212 = vperm.xlu0 %211, %v204
        %v213 = vpop.permute.xlu0 %212
        %v216 = vcombine.high %v202, %v202
        %vm217 = vcmask 31744
        %v219 = vsel %vm217, %v200, 0
        %v222 = vsel %vm217, %v201, 0
        %vm224 = vcmask 1043456
        %v225 = vsel %vm224, %v202, 0
        %v227 = vsel %vm224, %v216, 0
        %229 = vmatprep.subr.mxu0 %v227
        %230 = vmatpush1.msra.mxu0 %v225
        %231 = vmatprep.subr.mxu0 0.0
        %232 = vmatpush1.msra.mxu0 0.0
        %233 = vmatprep.subr.mxu0 0.0
        %234 = vmatpush1.msra.mxu0 0.0
        %235 = vmatprep.subr.mxu0 0.0
        %236 = vmatpush1.msra.mxu0 0.0
        %237 = vmatprep.subr.mxu0 0.0
        %238 = vmatpush1.msra.mxu0 0.0
        %239 = vmatprep.subr.mxu0 0.0
        %240 = vmatpush1.msra.mxu0 0.0
        %241 = vmatprep.subr.mxu0 0.0
        %242 = vmatpush1.msra.mxu0 0.0
        %243 = vmatprep.subr.mxu0 0.0
        %244 = vmatpush1.msra.mxu0 0.0
        %245 = vmatprep.subr.mxu0 0.0
        %246 = vmatpush1.msra.mxu0 0.0
        %247 = vmatprep.subr.mxu0 0.0
        %248 = vmatpush1.msra.mxu0 0.0
        %249 = vmatprep.subr.mxu0 0.0
        %250 = vmatpush1.msra.mxu0 0.0
        %251 = vmatprep.subr.mxu0 0.0
        %252 = vmatpush1.msra.mxu0 0.0
        %253 = vmatprep.subr.mxu0 0.0
        %254 = vmatpush1.msra.mxu0 0.0
        %255 = vmatprep.subr.mxu0 0.0
        %256 = vmatpush1.msra.mxu0 0.0
        %257 = vmatprep.subr.mxu0 0.0
        %258 = vmatpush1.msra.mxu0 0.0
        %259 = vmatprep.subr.mxu0 0.0
        %260 = vmatpush1.msra.mxu0 0.0
        %261 = vmatprep.subr.mxu0 0.0
        %262 = vmatpush1.msra.mxu0 0.0
        %263 = vmatprep.subr.mxu0 0.0
        %264 = vmatpush1.msra.mxu0 0.0
        %265 = vmatprep.subr.mxu0 0.0
        %266 = vmatpush1.msra.mxu0 0.0
        %267 = vmatprep.subr.mxu0 0.0
        %268 = vmatpush1.msra.mxu0 0.0
        %269 = vmatprep.subr.mxu0 0.0
        %270 = vmatpush1.msra.mxu0 0.0
        %271 = vmatprep.subr.mxu0 0.0
        %272 = vmatpush1.msra.mxu0 0.0
        %273 = vmatprep.subr.mxu0 0.0
        %274 = vmatpush1.msra.mxu0 0.0
        %275 = vmatprep.subr.mxu0 0.0
        %276 = vmatpush1.msra.mxu0 0.0
        %277 = vmatprep.subr.mxu0 0.0
        %278 = vmatpush1.msra.mxu0 0.0
        %279 = vmatprep.subr.mxu0 0.0
        %280 = vmatpush1.msra.mxu0 0.0
        %281 = vmatprep.subr.mxu0 0.0
        %282 = vmatpush1.msra.mxu0 0.0
        %283 = vmatprep.subr.mxu0 0.0
        %284 = vmatpush1.msra.mxu0 0.0
        %285 = vmatprep.subr.mxu0 0.0
        %286 = vmatpush1.msra.mxu0 0.0
        %287 = vmatprep.subr.mxu0 0.0
        %288 = vmatpush1.msra.mxu0 0.0
        %289 = vmatprep.subr.mxu0 0.0
        %290 = vmatpush1.msra.mxu0 0.0
        %291 = vmatprep.subr.mxu0 0.0
        %292 = vmatpush1.msra.mxu0 0.0
        %293 = vmatprep.mubr.f32.mxu0 0.0
        %294 = vmatmul.mubr.f32.gmra.mrb[0].mxu0 %v219
        %v295 = vpop.f32.mrb[0].mxu0
        %v296 = vadd.f32 %v208, %v295
        %v297 = vpop.f32.mrb[0].mxu0
        %v298 = vadd.f32 %v208, %v297
        %299 = vmatprep.mubr.f32.mxu0 0.0
        %300 = vmatmul.mubr.f32.gmra.mrb[0].mxu0 %v222
        %v301 = vpop.f32.mrb[0].mxu0
        %v302 = vadd.f32 %v213, %v301
        %v303 = vpop.f32.mrb[0].mxu0
        %v304 = vadd.f32 %v213, %v303
        %305 = vdwg.mxu0
        %v306 = vmax.f32 %v296, 0.0
        %v307 = vmax.f32 %v298, 0.0
        %v308 = vmax.f32 %v302, 0.0
        %v309 = vmax.f32 %v304, 0.0
        %310 = vst [vmem:[%s188] sm:$0xff] %v306
        %311 = vst [vmem:[%s188 + $0x8] sm:$0xff] %v307
        %312 = vst [vmem:[%s188 + $0x10] sm:$0xff] %v308
        %313 = vst [vmem:[%s188 + $0x18] sm:$0xff] %v309
        %s314 = sand.u32 %s109, 1
        %s315 = scalar_lea.sflag [#allocation3], %s314
        %s316 = sand.u32 %s109, 1
        %s317 = smul.addr %s316, 32
        %s318 = scalar_lea.vmem [#allocation2], %s317
        // Predicated region
        $region33: #{tpu_custom_call.1} parent=31 // pred_check
          %p319 = pneg %p119
        $region34: #{tpu_custom_call.1} parent=31 // pred_check_branch
          %321 = sbr.rel (%p319) target = $region36
        $region35: #{tpu_custom_call.1} parent=31 // pred_region
          %s322 = smul.u32 2, %s22
          %s324 = ssub.s32 512, 512
          %325 = vsyncadd %s315, %s324
          %s326 = smul.addr %s21, 4
          %s327 = sadd.s32 %s322, %s326
          %s328 = smul.addr %s327, 128
          %s329 = scalar_lea.hbm %s3, %s328
          %s330 = sshll.u32 %s318, 4
          %s331 = int_to_ptr.vmem [resolvable:$true] %s330
          %336 = dma.vmem_to_hbm [thread:$0]  %s331, 512, %s329, %s315, 256, 256, 16
        $region36: #{tpu_custom_call.1} parent=31 // pred_fallthru
          _
      $region32: #{tpu_custom_call.1} parent=5 // pred_fallthru
        _
      %p337 = scmp.le.s32.totalorder 2, %s12
      // Predicated region
      $region37: #{tpu_custom_call.1} parent=5 // pred_check
        %p338 = pneg %p337
      $region38: #{tpu_custom_call.1} parent=5 // pred_check_branch
        %340 = sbr.rel (%p338) target = $region40
      $region39: #{tpu_custom_call.1} parent=5 // pred_region
        %s341 = ssub.s32 %s12, 2
        // Predicated region
        $region41: #{tpu_custom_call.1} parent=39 // pred_check
          %p342 = pneg %p125
        $region42: #{tpu_custom_call.1} parent=39 // pred_check_branch
          %344 = sbr.rel (%p342) target = $region44
        $region43: #{tpu_custom_call.1} parent=39 // pred_region
          %s345 = sand.u32 %s110, 1
          %s346 = scalar_lea.sflag [#allocation3], %s345
          %s347 = sand.u32 %s110, 1
          %s348 = smul.addr %s347, 32
          %s349 = scalar_lea.vmem [#allocation2], %s348
          %350 = dma.done %s346, 512
        $region44: #{tpu_custom_call.1} parent=39 // pred_fallthru
          _
      $region40: #{tpu_custom_call.1} parent=5 // pred_fallthru
        _
    $region6: #{tpu_custom_call.1} parent=1 // loop_footer
      %s16 = sadd.s32 1, %s12
    $region7: #{tpu_custom_call.1} parent=1 // loop_footer_branch
      %11 = sbr.rel target = $region3
    $region8: #{tpu_custom_call.1} parent=1 // loop_exit
      _
    %351 = vsyncpa [#allocation3], 1
    %s352 = scalar_lea.sflag [#allocation3], 1
    %353 = vsyncpa %s352, 1

</llo_original>
